<compile_context>
chip_gen: v6e
topology: v6e:2x2x1
jax: 0.10.0
libtpu: 0.0.40
codegen_flags: <defaults>
</compile_context>

<pallas_src>
import jax
import jax.numpy as jnp
from jax.experimental import pallas as pl
from jax.experimental.pallas import tpu as pltpu

# ---- small synthetic hyper-parameters standing in for MossFormer2_SS_16K ----
ENC_KERNEL = 16      # encoder Conv1d kernel size L
ENC_STRIDE = 8       # encoder stride (L // 2)
ENC_DIM    = 64      # encoder output channels N
HID_DIM    = 128     # mask-net hidden dim
NUM_SPKS   = 2       # number of separated sources
LN_EPS     = 1e-5    # PyTorch nn.LayerNorm default


def _round_up(x, m):
    return (x + m - 1) // m * m


# ---------------------------- fused Pallas kernel ----------------------------

def fused_sep_kernel(x_ref, w_enc_ref, b_enc_ref, g_ref, beta_ref,
                     w_in_ref, w_uv_ref, w_out_ref, b_out_ref, w_dec_ref,
                     o_ref):
    """Encoder + mask-net + fused per-speaker masked decoder over a row block.

    x_ref:     [TM, L]                  bf16 framed mixture rows
    w_uv_ref:  [H, 2H]                  bf16 (w_u || w_v, fused GLU projection)
    w_out_ref: [H, NUM_SPKS*N]          bf16 (both speakers in one matmul)
    w_dec_ref: [NUM_SPKS*N, NUM_SPKS*L] bf16 block-diagonal decoder
    o_ref:     [TM, NUM_SPKS*L]         bf16 decoded frames (speaker-major)
    """
    # ---- encoder: Conv1d(1 -> N, L, stride S) as framed matmul + ReLU ----
    enc = jnp.dot(x_ref[...], w_enc_ref[...],
                  preferred_element_type=jnp.float32)              # [TM, N] f32
    enc = jnp.maximum(enc + b_enc_ref[...], 0.0)

    # ---- mask network: LayerNorm (f32) -> bottleneck -> fused GLU ----
    mu = jnp.mean(enc, axis=-1, keepdims=True)
    var = jnp.mean((enc - mu) ** 2, axis=-1, keepdims=True)
    xn = (enc - mu) * jax.lax.rsqrt(var + LN_EPS)
    xn = xn * g_ref[...] + beta_ref[...]

    h16 = jnp.dot(xn.astype(jnp.bfloat16), w_in_ref[...],
                  preferred_element_type=jnp.float32).astype(jnp.bfloat16)
    uv = jnp.dot(h16, w_uv_ref[...],
                 preferred_element_type=jnp.float32)               # [TM, 2H]
    u = uv[:, :HID_DIM]
    v = uv[:, HID_DIM:]
    gate = (u * jax.nn.sigmoid(v)).astype(jnp.bfloat16)            # [TM, H]

    # ---- both speakers' ReLU masks in ONE matmul ----
    m = jnp.dot(gate, w_out_ref[...],
                preferred_element_type=jnp.float32) + b_out_ref[...]
    mask_both = jnp.maximum(m, 0.0)                                # [TM, S*N]

    # ---- fused masking + block-diagonal decoder (K = NUM_SPKS*N = 128) ----
    enc_both = jnp.concatenate([enc] * NUM_SPKS, axis=-1)          # [TM, S*N]
    masked = (enc_both * mask_both).astype(jnp.bfloat16)
    dec = jnp.dot(masked, w_dec_ref[...],
                  preferred_element_type=jnp.float32)              # [TM, S*L]

    o_ref[...] = dec.astype(o_ref.dtype)                           # bf16 store


# ---------------------------- parameters ----------------------------

def init_params(key):
    ks = jax.random.split(key, 6)

    def glorot(k, shape):
        s = jnp.sqrt(2.0 / (shape[0] + shape[1]))
        return (jax.random.normal(k, shape, jnp.float32) * s).astype(jnp.float32)

    return dict(
        w_enc=glorot(ks[0], (ENC_KERNEL, ENC_DIM)),
        b_enc=jnp.zeros((1, ENC_DIM), jnp.float32),
        ln_g=jnp.ones((1, ENC_DIM), jnp.float32),
        ln_b=jnp.zeros((1, ENC_DIM), jnp.float32),
        w_in=glorot(ks[1], (ENC_DIM, HID_DIM)),
        w_u=glorot(ks[2], (HID_DIM, HID_DIM)),
        w_v=glorot(ks[3], (HID_DIM, HID_DIM)),
        w_out=glorot(ks[4], (HID_DIM, NUM_SPKS * ENC_DIM)),
        b_out=jnp.zeros((1, NUM_SPKS * ENC_DIM), jnp.float32),
        w_dec=glorot(ks[5], (ENC_DIM, ENC_KERNEL)),
    )


# ---------------------------- forward wrapper ----------------------------

@jax.jit
def network_wrapper_forward(params, mixture):
    """mixture: [B, T] float32  ->  est_sources: [B, NUM_SPKS, T] float32."""
    B, T = mixture.shape
    L, S, N = ENC_KERNEL, ENC_STRIDE, ENC_DIM
    F = (T - L) // S + 1
    M = B * F

    # ---- framing in bf16 (stride == L/2): frame f = [chunk f | chunk f+1] ----
    mix16 = mixture.astype(jnp.bfloat16)
    chunks = mix16[:, :(F + 1) * S].reshape(B, F + 1, S)
    frames = jnp.concatenate([chunks[:, :F], chunks[:, 1:F + 1]], axis=-1)
    x = frames.reshape(M, L)                                       # [M, L] bf16

    # ---- row tiling: big blocks to amortize ~0.35us/step overhead, but keep
    #      >=2 grid steps so both v7x TensorCores get work ----
    TM_MAX = 2048
    M8 = _round_up(M, 8)
    TM = max(8, min(TM_MAX, _round_up((M8 + 1) // 2, 8)))
    M_pad = _round_up(M, TM)
    if M_pad != M:
        x = jnp.pad(x, ((0, M_pad - M), (0, 0)))

    # ---- fused weights (9 VMEM-resident operands, constant index maps) ----
    bf = lambda a: a.astype(jnp.bfloat16)
    w_uv = jnp.concatenate([params['w_u'], params['w_v']], axis=-1)  # [H, 2H]
    # block-diagonal decoder: speaker-concatenated output in one K=128 matmul
    w_dec_bd = jnp.kron(jnp.eye(NUM_SPKS, dtype=jnp.float32), params['w_dec'])
    weight_args = [bf(params['w_enc']), params['b_enc'],
                   params['ln_g'], params['ln_b'],
                   bf(params['w_in']), bf(w_uv),
                   bf(params['w_out']), params['b_out'],
                   bf(w_dec_bd)]

    row_spec = pl.BlockSpec((TM, L), lambda i: (i, 0))
    out_spec = pl.BlockSpec((TM, NUM_SPKS * L), lambda i: (i, 0))
    const_spec = lambda a: pl.BlockSpec(a.shape, lambda i: (0, 0))

    frames_out = pl.pallas_call(
        fused_sep_kernel,
        out_shape=jax.ShapeDtypeStruct((M_pad, NUM_SPKS * L), jnp.bfloat16),
        grid=(M_pad // TM,),
        in_specs=[row_spec] + [const_spec(a) for a in weight_args],
        out_specs=out_spec,
        compiler_params=pltpu.CompilerParams(
            dimension_semantics=("parallel",),       # v7x: shard rows over 2 TCs
            # <~8 MiB f32 intermediates at TM=2048 + tiny weights; 32 MiB is the
            # v7x scoped default and well inside its 64 MiB physical VMEM.
            vmem_limit_bytes=32 * 1024 * 1024),
    )(x, *weight_args)

    frames_out = frames_out[:M].reshape(B, F, NUM_SPKS, L)          # bf16

    # ---- overlap-add via reshape (stride == L/2); accumulate in f32 ----
    half = F * S
    est_sources = []
    for s in range(NUM_SPKS):
        f_s = frames_out[:, :, s, :]                                # [B, F, L] bf16
        h1 = f_s[..., :S].reshape(B, half).astype(jnp.float32)
        h2 = f_s[..., S:].reshape(B, half).astype(jnp.float32)
        wav = (jnp.pad(h1, ((0, 0), (0, T - half)))
               + jnp.pad(h2, ((0, 0), (S, T - half - S))))
        est_sources.append(wav)

    return jnp.stack(est_sources, axis=1)                           # [B, SPK, T] f32


# ---------------------------- demo ----------------------------

if __name__ == "__main__":
    key = jax.random.PRNGKey(0)
    pkey, xkey = jax.random.split(key)
    params = init_params(pkey)

    B, T = 2, 512
    mixture = jax.random.normal(xkey, (B, T), dtype=jnp.float32)

    est_sources = network_wrapper_forward(params, mixture)
    jax.block_until_ready(est_sources)

    assert est_sources.shape == (B, NUM_SPKS, T), est_sources.shape
    assert est_sources.dtype == jnp.float32
    assert bool(jnp.all(jnp.isfinite(est_sources)))
    print("KERNEL_OK")
</pallas_src>

<mosaic_0001>
module attributes {stable_mosaic.version = 11 : i64} {
  func.func @fused_sep_kernel(%arg0: i32, %arg1: memref<64x16xbf16, #tpu.memory_space<vmem>>, %arg2: memref<16x64xbf16, #tpu.memory_space<vmem>>, %arg3: memref<1x64xf32, #tpu.memory_space<vmem>>, %arg4: memref<1x64xf32, #tpu.memory_space<vmem>>, %arg5: memref<1x64xf32, #tpu.memory_space<vmem>>, %arg6: memref<64x128xbf16, #tpu.memory_space<vmem>>, %arg7: memref<128x256xbf16, #tpu.memory_space<vmem>>, %arg8: memref<128x128xbf16, #tpu.memory_space<vmem>>, %arg9: memref<1x128xf32, #tpu.memory_space<vmem>>, %arg10: memref<128x32xbf16, #tpu.memory_space<vmem>>, %arg11: memref<64x32xbf16, #tpu.memory_space<vmem>>) attributes {dimension_semantics = [#tpu.dimension_semantics<parallel>], iteration_bounds = array<i64: 2>, scalar_prefetch = 0 : i64, scratch_operands = 0 : i64, tpu.core_type = #tpu.core_type<tc>, window_params = [{transform_indices = @transform_0, window_bounds = array<i64: 64, 16>}, {pipeline_mode = #tpu.pipeline_mode<synchronous>, transform_indices = @transform_1, window_bounds = array<i64: 16, 64>}, {pipeline_mode = #tpu.pipeline_mode<synchronous>, transform_indices = @transform_2, window_bounds = array<i64: 1, 64>}, {pipeline_mode = #tpu.pipeline_mode<synchronous>, transform_indices = @transform_3, window_bounds = array<i64: 1, 64>}, {pipeline_mode = #tpu.pipeline_mode<synchronous>, transform_indices = @transform_4, window_bounds = array<i64: 1, 64>}, {pipeline_mode = #tpu.pipeline_mode<synchronous>, transform_indices = @transform_5, window_bounds = array<i64: 64, 128>}, {pipeline_mode = #tpu.pipeline_mode<synchronous>, transform_indices = @transform_6, window_bounds = array<i64: 128, 256>}, {pipeline_mode = #tpu.pipeline_mode<synchronous>, transform_indices = @transform_7, window_bounds = array<i64: 128, 128>}, {pipeline_mode = #tpu.pipeline_mode<synchronous>, transform_indices = @transform_8, window_bounds = array<i64: 1, 128>}, {pipeline_mode = #tpu.pipeline_mode<synchronous>, transform_indices = @transform_9, window_bounds = array<i64: 128, 32>}, {transform_indices = @transform_10, window_bounds = array<i64: 64, 32>}]} {
    %c0 = arith.constant 0 : index
    %c0_0 = arith.constant 0 : index
    %0 = vector.load %arg1[%c0, %c0_0] : memref<64x16xbf16, #tpu.memory_space<vmem>>, vector<64x16xbf16>
    %c0_1 = arith.constant 0 : index
    %c0_2 = arith.constant 0 : index
    %1 = vector.load %arg2[%c0_1, %c0_2] : memref<16x64xbf16, #tpu.memory_space<vmem>>, vector<16x64xbf16>
    %cst = arith.constant dense<0.000000e+00> : vector<64x64xf32>
    %2 = tpu.matmul %0, %1, %cst {dimension_numbers = #tpu.dot_dimension_numbers<[1], [0], [0], [1], [0, 0, 1, 1], [], []>} : vector<64x16xbf16>, vector<16x64xbf16>, vector<64x64xf32> -> vector<64x64xf32>
    %c0_3 = arith.constant 0 : index
    %c0_4 = arith.constant 0 : index
    %3 = vector.load %arg3[%c0_3, %c0_4] : memref<1x64xf32, #tpu.memory_space<vmem>>, vector<1x64xf32>
    %4 = vector.broadcast %3 : vector<1x64xf32> to vector<64x64xf32>
    %5 = arith.addf %2, %4 : vector<64x64xf32>
    %cst_5 = arith.constant 0.000000e+00 : f32
    %6 = vector.broadcast %cst_5 : f32 to vector<64x64xf32>
    %7 = arith.maximumf %5, %6 : vector<64x64xf32>
    %cst_6 = arith.constant dense<0.000000e+00> : vector<64xf32>
    %8 = vector.multi_reduction <add>, %7, %cst_6 [1] : vector<64x64xf32> to vector<64xf32>
    %9 = vector.shape_cast %8 : vector<64xf32> to vector<64x1xf32>
    %cst_7 = arith.constant 6.400000e+01 : f32
    %10 = vector.broadcast %cst_7 : f32 to vector<64x1xf32>
    %11 = arith.divf %9, %10 : vector<64x1xf32>
    %12 = vector.broadcast %11 : vector<64x1xf32> to vector<64x64xf32>
    %13 = arith.subf %7, %12 : vector<64x64xf32>
    %14 = arith.mulf %13, %13 : vector<64x64xf32>
    %cst_8 = arith.constant dense<0.000000e+00> : vector<64xf32>
    %15 = vector.multi_reduction <add>, %14, %cst_8 [1] : vector<64x64xf32> to vector<64xf32>
    %16 = vector.shape_cast %15 : vector<64xf32> to vector<64x1xf32>
    %cst_9 = arith.constant 6.400000e+01 : f32
    %17 = vector.broadcast %cst_9 : f32 to vector<64x1xf32>
    %18 = arith.divf %16, %17 : vector<64x1xf32>
    %19 = vector.broadcast %11 : vector<64x1xf32> to vector<64x64xf32>
    %20 = arith.subf %7, %19 : vector<64x64xf32>
    %cst_10 = arith.constant 9.99999974E-6 : f32
    %21 = vector.broadcast %cst_10 : f32 to vector<64x1xf32>
    %22 = arith.addf %18, %21 : vector<64x1xf32>
    %23 = math.rsqrt %22 : vector<64x1xf32>
    %24 = vector.broadcast %23 : vector<64x1xf32> to vector<64x64xf32>
    %25 = arith.mulf %20, %24 : vector<64x64xf32>
    %c0_11 = arith.constant 0 : index
    %c0_12 = arith.constant 0 : index
    %26 = vector.load %arg4[%c0_11, %c0_12] : memref<1x64xf32, #tpu.memory_space<vmem>>, vector<1x64xf32>
    %27 = vector.broadcast %26 : vector<1x64xf32> to vector<64x64xf32>
    %28 = arith.mulf %25, %27 : vector<64x64xf32>
    %c0_13 = arith.constant 0 : index
    %c0_14 = arith.constant 0 : index
    %29 = vector.load %arg5[%c0_13, %c0_14] : memref<1x64xf32, #tpu.memory_space<vmem>>, vector<1x64xf32>
    %30 = vector.broadcast %29 : vector<1x64xf32> to vector<64x64xf32>
    %31 = arith.addf %28, %30 : vector<64x64xf32>
    %32 = arith.truncf %31 : vector<64x64xf32> to vector<64x64xbf16>
    %c0_15 = arith.constant 0 : index
    %c0_16 = arith.constant 0 : index
    %33 = vector.load %arg6[%c0_15, %c0_16] : memref<64x128xbf16, #tpu.memory_space<vmem>>, vector<64x128xbf16>
    %cst_17 = arith.constant dense<0.000000e+00> : vector<64x128xf32>
    %34 = tpu.matmul %32, %33, %cst_17 {dimension_numbers = #tpu.dot_dimension_numbers<[1], [0], [0], [1], [0, 0, 1, 1], [], []>} : vector<64x64xbf16>, vector<64x128xbf16>, vector<64x128xf32> -> vector<64x128xf32>
    %35 = arith.truncf %34 : vector<64x128xf32> to vector<64x128xbf16>
    %c0_18 = arith.constant 0 : index
    %c0_19 = arith.constant 0 : index
    %36 = vector.load %arg7[%c0_18, %c0_19] : memref<128x256xbf16, #tpu.memory_space<vmem>>, vector<128x256xbf16>
    %cst_20 = arith.constant dense<0.000000e+00> : vector<64x256xf32>
    %37 = tpu.matmul %35, %36, %cst_20 {dimension_numbers = #tpu.dot_dimension_numbers<[1], [0], [0], [1], [0, 0, 1, 1], [], []>} : vector<64x128xbf16>, vector<128x256xbf16>, vector<64x256xf32> -> vector<64x256xf32>
    %38 = vector.extract_strided_slice %37 {offsets = [0, 0], sizes = [64, 128], strides = [1, 1]} : vector<64x256xf32> to vector<64x128xf32>
    %39 = vector.extract_strided_slice %37 {offsets = [0, 128], sizes = [64, 128], strides = [1, 1]} : vector<64x256xf32> to vector<64x128xf32>
    %40 = arith.negf %39 : vector<64x128xf32>
    %41 = math.exp %40 : vector<64x128xf32>
    %cst_21 = arith.constant 1.000000e+00 : f32
    %42 = vector.broadcast %cst_21 : f32 to vector<64x128xf32>
    %43 = arith.addf %42, %41 : vector<64x128xf32>
    %44 = arith.divf %42, %43 : vector<64x128xf32>
    %45 = arith.mulf %38, %44 : vector<64x128xf32>
    %46 = arith.truncf %45 : vector<64x128xf32> to vector<64x128xbf16>
    %c0_22 = arith.constant 0 : index
    %c0_23 = arith.constant 0 : index
    %47 = vector.load %arg8[%c0_22, %c0_23] : memref<128x128xbf16, #tpu.memory_space<vmem>>, vector<128x128xbf16>
    %cst_24 = arith.constant dense<0.000000e+00> : vector<64x128xf32>
    %48 = tpu.matmul %46, %47, %cst_24 {dimension_numbers = #tpu.dot_dimension_numbers<[1], [0], [0], [1], [0, 0, 1, 1], [], []>} : vector<64x128xbf16>, vector<128x128xbf16>, vector<64x128xf32> -> vector<64x128xf32>
    %c0_25 = arith.constant 0 : index
    %c0_26 = arith.constant 0 : index
    %49 = vector.load %arg9[%c0_25, %c0_26] : memref<1x128xf32, #tpu.memory_space<vmem>>, vector<1x128xf32>
    %50 = vector.broadcast %49 : vector<1x128xf32> to vector<64x128xf32>
    %51 = arith.addf %48, %50 : vector<64x128xf32>
    %cst_27 = arith.constant 0.000000e+00 : f32
    %52 = vector.broadcast %cst_27 : f32 to vector<64x128xf32>
    %53 = arith.maximumf %51, %52 : vector<64x128xf32>
    %54 = tpu.concatenate %7, %7 in 1 : vector<64x64xf32>, vector<64x64xf32> -> vector<64x128xf32>
    %55 = arith.mulf %54, %53 : vector<64x128xf32>
    %56 = arith.truncf %55 : vector<64x128xf32> to vector<64x128xbf16>
    %c0_28 = arith.constant 0 : index
    %c0_29 = arith.constant 0 : index
    %57 = vector.load %arg10[%c0_28, %c0_29] : memref<128x32xbf16, #tpu.memory_space<vmem>>, vector<128x32xbf16>
    %cst_30 = arith.constant dense<0.000000e+00> : vector<64x32xf32>
    %58 = tpu.matmul %56, %57, %cst_30 {dimension_numbers = #tpu.dot_dimension_numbers<[1], [0], [0], [1], [0, 0, 1, 1], [], []>} : vector<64x128xbf16>, vector<128x32xbf16>, vector<64x32xf32> -> vector<64x32xf32>
    %59 = arith.truncf %58 : vector<64x32xf32> to vector<64x32xbf16>
    %c0_31 = arith.constant 0 : index
    %c0_32 = arith.constant 0 : index
    %60 = vector.load %arg11[%c0_31, %c0_32] : memref<64x32xbf16, #tpu.memory_space<vmem>>, vector<64x32xbf16>
    tpu.vector_store %arg11[%c0_31, %c0_32], %59 {strides = array<i32>} : memref<64x32xbf16, #tpu.memory_space<vmem>>, vector<64x32xbf16>,
    return
  }
  func.func @transform_0(%arg0: i32) -> (i32, i32) {
    %c0_i32 = arith.constant 0 : i32
    %c0_i32_0 = arith.constant 0 : i32
    return %arg0, %c0_i32 : i32, i32
  }
  func.func @transform_1(%arg0: i32) -> (i32, i32) {
    %c0_i32 = arith.constant 0 : i32
    %c0_i32_0 = arith.constant 0 : i32
    %c0_i32_1 = arith.constant 0 : i32
    return %c0_i32, %c0_i32_0 : i32, i32
  }
  func.func @transform_2(%arg0: i32) -> (i32, i32) {
    %c0_i32 = arith.constant 0 : i32
    %c0_i32_0 = arith.constant 0 : i32
    %c0_i32_1 = arith.constant 0 : i32
    return %c0_i32, %c0_i32_0 : i32, i32
  }
  func.func @transform_3(%arg0: i32) -> (i32, i32) {
    %c0_i32 = arith.constant 0 : i32
    %c0_i32_0 = arith.constant 0 : i32
    %c0_i32_1 = arith.constant 0 : i32
    return %c0_i32, %c0_i32_0 : i32, i32
  }
  func.func @transform_4(%arg0: i32) -> (i32, i32) {
    %c0_i32 = arith.constant 0 : i32
    %c0_i32_0 = arith.constant 0 : i32
    %c0_i32_1 = arith.constant 0 : i32
    return %c0_i32, %c0_i32_0 : i32, i32
  }
  func.func @transform_5(%arg0: i32) -> (i32, i32) {
    %c0_i32 = arith.constant 0 : i32
    %c0_i32_0 = arith.constant 0 : i32
    %c0_i32_1 = arith.constant 0 : i32
    return %c0_i32, %c0_i32_0 : i32, i32
  }
  func.func @transform_6(%arg0: i32) -> (i32, i32) {
    %c0_i32 = arith.constant 0 : i32
    %c0_i32_0 = arith.constant 0 : i32
    %c0_i32_1 = arith.constant 0 : i32
    return %c0_i32, %c0_i32_0 : i32, i32
  }
  func.func @transform_7(%arg0: i32) -> (i32, i32) {
    %c0_i32 = arith.constant 0 : i32
    %c0_i32_0 = arith.constant 0 : i32
    %c0_i32_1 = arith.constant 0 : i32
    return %c0_i32, %c0_i32_0 : i32, i32
  }
  func.func @transform_8(%arg0: i32) -> (i32, i32) {
    %c0_i32 = arith.constant 0 : i32
    %c0_i32_0 = arith.constant 0 : i32
    %c0_i32_1 = arith.constant 0 : i32
    return %c0_i32, %c0_i32_0 : i32, i32
  }
  func.func @transform_9(%arg0: i32) -> (i32, i32) {
    %c0_i32 = arith.constant 0 : i32
    %c0_i32_0 = arith.constant 0 : i32
    %c0_i32_1 = arith.constant 0 : i32
    return %c0_i32, %c0_i32_0 : i32, i32
  }
  func.func @transform_10(%arg0: i32) -> (i32, i32) {
    %c0_i32 = arith.constant 0 : i32
    %c0_i32_0 = arith.constant 0 : i32
    return %arg0, %c0_i32 : i32, i32
  }
}

</mosaic_0001>

<llo_original>
// kernel: network_wrapper_forward.1
$region0: #{network_wrapper_forward.1}
  #allocation0 [shape = 'u32[]', space=smem, size = 0x4, offset = 0x4, fixed_abs, tag = 'smem constant byte address 0x4 - core index']
  #allocation1 [shape = 'u32[144,128]{1,0:T(1,128)}', space=vmem, size = 0x12000, scoped, tag = 'internal scratch']
  %s0 = inlined_call_operand.vmem [shape: bf16[128,16], index: 0, kind: input, shape index: {}]
  %s1 = inlined_call_operand.vmem [shape: bf16[16,64], index: 1, kind: input, shape index: {}]
  %s2 = inlined_call_operand.vmem [shape: f32[1,64], index: 2, kind: input, shape index: {}]
  %s3 = inlined_call_operand.vmem [shape: f32[1,64], index: 3, kind: input, shape index: {}]
  %s4 = inlined_call_operand.vmem [shape: f32[1,64], index: 4, kind: input, shape index: {}]
  %s5 = inlined_call_operand.vmem [shape: bf16[64,128], index: 5, kind: input, shape index: {}]
  %s6 = inlined_call_operand.vmem [shape: bf16[128,256], index: 6, kind: input, shape index: {}]
  %s7 = inlined_call_operand.vmem [shape: bf16[128,128], index: 7, kind: input, shape index: {}]
  %s8 = inlined_call_operand.vmem [shape: f32[1,128], index: 8, kind: input, shape index: {}]
  %s9 = inlined_call_operand.vmem [shape: bf16[128,32], index: 9, kind: input, shape index: {}]
  %s10 = inlined_call_operand.vmem [shape: bf16[128,32], index: 10, kind: output, shape index: {}]
  %s11 = sld [smem:[#allocation0]]
  $region73: #{network_wrapper_forward.1} parent=0
    _
  %s13 = ssub.s32 1, %s11
  %s14 = scalar_select 0, %s13, %s11
  loop: start=0, step=1, limit=4
  $region2: #{network_wrapper_forward.1} parent=0 // loop_pre_header
    _
  $region3: #{network_wrapper_forward.1} parent=0 // loop_header
    %s16 = sphi 0, %s20
    %p17 = scmp.ge.s32.totalorder %s16, 4
    %s26 = sphi 0, %s28
    %s29 = sphi 0, %s26
    %s30 = sphi 0, %s29
    %s46 = sphi 0, %s30
    %s50 = sphi 0, %s50
    %s52 = sphi 0, %s50
    %s53 = sphi 0, %s52
    %s67 = sphi 0, %s53
    %s71 = sphi 0, %s71
    %s73 = sphi 0, %s71
    %s74 = sphi 0, %s73
    %s88 = sphi 0, %s74
    %s92 = sphi 0, %s92
    %s94 = sphi 0, %s92
    %s95 = sphi 0, %s94
    %s109 = sphi 0, %s95
    %s113 = sphi 0, %s113
    %s115 = sphi 0, %s113
    %s116 = sphi 0, %s115
    %s130 = sphi 0, %s116
    %s134 = sphi 0, %s134
    %s136 = sphi 0, %s134
    %s137 = sphi 0, %s136
    %s151 = sphi 0, %s137
    %s155 = sphi 0, %s155
    %s157 = sphi 0, %s155
    %s158 = sphi 0, %s157
    %s172 = sphi 0, %s158
    %s176 = sphi 0, %s176
    %s178 = sphi 0, %s176
    %s179 = sphi 0, %s178
    %s193 = sphi 0, %s179
    %s197 = sphi 0, %s197
    %s199 = sphi 0, %s197
    %s200 = sphi 0, %s199
    %s214 = sphi 0, %s200
    %s218 = sphi 0, %s218
    %s220 = sphi 0, %s218
    %s221 = sphi 0, %s220
    %s235 = sphi 0, %s221
    %s241 = sphi 0, %s243
    %s244 = sphi 0, %s241
    %s245 = sphi 0, %s244
    %s261 = sphi 0, %s245
  $region4: #{network_wrapper_forward.1} parent=0 // loop_header_branch
    %19 = sbr.rel (%p17) target = $region8
  $region5: #{network_wrapper_forward.1} parent=0 // loop_body
    %s21 = ssub.s32 %s16, 1
    %s22 = ssub.s32 %s16, 2
    %s23 = sadd.s32 %s16, 1
    %s24 = ssub.s32 %s16, %s23
    %p25 = scmp.eq.s32.totalorder %s24, 0
    %s27 = sadd.s32 %s26, 1
    %s28 = scalar_select %p25, %s26, %s27
    %p31 = pneg %p25
    %p32 = scmp.eq.s32.totalorder %s16, 1
    %p33 = por %p31, %p32
    %p34 = scmp.ne.s32.totalorder %s26, %s29
    %p35 = scmp.eq.s32.totalorder %s16, 0
    %p36 = por %p34, %p35
    %p37 = scmp.ne.s32.totalorder %s26, %s29
    %p38 = scmp.eq.s32.totalorder %s21, 1
    %p39 = por %p37, %p38
    %p40 = scmp.ne.s32.totalorder %s29, %s30
    %p41 = scmp.eq.s32.totalorder %s21, 0
    %p42 = por %p40, %p41
    %p43 = scmp.ne.s32.totalorder %s29, %s30
    %p44 = scmp.eq.s32.totalorder %s22, 1
    %p45 = por %p43, %p44
    %p47 = scmp.ne.s32.totalorder %s30, %s46
    %p48 = scmp.eq.s32.totalorder %s22, 0
    %p49 = por %p47, %p48
    %s51 = sadd.s32 %s50, 1
    %p54 = scmp.eq.s32.totalorder %s16, 1
    %p55 = scmp.ne.s32.totalorder %s50, %s52
    %p56 = scmp.eq.s32.totalorder %s16, 0
    %p57 = por %p55, %p56
    %p58 = scmp.ne.s32.totalorder %s50, %s52
    %p59 = scmp.eq.s32.totalorder %s21, 1
    %p60 = por %p58, %p59
    %p61 = scmp.ne.s32.totalorder %s52, %s53
    %p62 = scmp.eq.s32.totalorder %s21, 0
    %p63 = por %p61, %p62
    %p64 = scmp.ne.s32.totalorder %s52, %s53
    %p65 = scmp.eq.s32.totalorder %s22, 1
    %p66 = por %p64, %p65
    %p68 = scmp.ne.s32.totalorder %s53, %s67
    %p69 = scmp.eq.s32.totalorder %s22, 0
    %p70 = por %p68, %p69
    %s72 = sadd.s32 %s71, 1
    %p75 = scmp.eq.s32.totalorder %s16, 1
    %p76 = scmp.ne.s32.totalorder %s71, %s73
    %p77 = scmp.eq.s32.totalorder %s16, 0
    %p78 = por %p76, %p77
    %p79 = scmp.ne.s32.totalorder %s71, %s73
    %p80 = scmp.eq.s32.totalorder %s21, 1
    %p81 = por %p79, %p80
    %p82 = scmp.ne.s32.totalorder %s73, %s74
    %p83 = scmp.eq.s32.totalorder %s21, 0
    %p84 = por %p82, %p83
    %p85 = scmp.ne.s32.totalorder %s73, %s74
    %p86 = scmp.eq.s32.totalorder %s22, 1
    %p87 = por %p85, %p86
    %p89 = scmp.ne.s32.totalorder %s74, %s88
    %p90 = scmp.eq.s32.totalorder %s22, 0
    %p91 = por %p89, %p90
    %s93 = sadd.s32 %s92, 1
    %p96 = scmp.eq.s32.totalorder %s16, 1
    %p97 = scmp.ne.s32.totalorder %s92, %s94
    %p98 = scmp.eq.s32.totalorder %s16, 0
    %p99 = por %p97, %p98
    %p100 = scmp.ne.s32.totalorder %s92, %s94
    %p101 = scmp.eq.s32.totalorder %s21, 1
    %p102 = por %p100, %p101
    %p103 = scmp.ne.s32.totalorder %s94, %s95
    %p104 = scmp.eq.s32.totalorder %s21, 0
    %p105 = por %p103, %p104
    %p106 = scmp.ne.s32.totalorder %s94, %s95
    %p107 = scmp.eq.s32.totalorder %s22, 1
    %p108 = por %p106, %p107
    %p110 = scmp.ne.s32.totalorder %s95, %s109
    %p111 = scmp.eq.s32.totalorder %s22, 0
    %p112 = por %p110, %p111
    %s114 = sadd.s32 %s113, 1
    %p117 = scmp.eq.s32.totalorder %s16, 1
    %p118 = scmp.ne.s32.totalorder %s113, %s115
    %p119 = scmp.eq.s32.totalorder %s16, 0
    %p120 = por %p118, %p119
    %p121 = scmp.ne.s32.totalorder %s113, %s115
    %p122 = scmp.eq.s32.totalorder %s21, 1
    %p123 = por %p121, %p122
    %p124 = scmp.ne.s32.totalorder %s115, %s116
    %p125 = scmp.eq.s32.totalorder %s21, 0
    %p126 = por %p124, %p125
    %p127 = scmp.ne.s32.totalorder %s115, %s116
    %p128 = scmp.eq.s32.totalorder %s22, 1
    %p129 = por %p127, %p128
    %p131 = scmp.ne.s32.totalorder %s116, %s130
    %p132 = scmp.eq.s32.totalorder %s22, 0
    %p133 = por %p131, %p132
    %s135 = sadd.s32 %s134, 1
    %p138 = scmp.eq.s32.totalorder %s16, 1
    %p139 = scmp.ne.s32.totalorder %s134, %s136
    %p140 = scmp.eq.s32.totalorder %s16, 0
    %p141 = por %p139, %p140
    %p142 = scmp.ne.s32.totalorder %s134, %s136
    %p143 = scmp.eq.s32.totalorder %s21, 1
    %p144 = por %p142, %p143
    %p145 = scmp.ne.s32.totalorder %s136, %s137
    %p146 = scmp.eq.s32.totalorder %s21, 0
    %p147 = por %p145, %p146
    %p148 = scmp.ne.s32.totalorder %s136, %s137
    %p149 = scmp.eq.s32.totalorder %s22, 1
    %p150 = por %p148, %p149
    %p152 = scmp.ne.s32.totalorder %s137, %s151
    %p153 = scmp.eq.s32.totalorder %s22, 0
    %p154 = por %p152, %p153
    %s156 = sadd.s32 %s155, 1
    %p159 = scmp.eq.s32.totalorder %s16, 1
    %p160 = scmp.ne.s32.totalorder %s155, %s157
    %p161 = scmp.eq.s32.totalorder %s16, 0
    %p162 = por %p160, %p161
    %p163 = scmp.ne.s32.totalorder %s155, %s157
    %p164 = scmp.eq.s32.totalorder %s21, 1
    %p165 = por %p163, %p164
    %p166 = scmp.ne.s32.totalorder %s157, %s158
    %p167 = scmp.eq.s32.totalorder %s21, 0
    %p168 = por %p166, %p167
    %p169 = scmp.ne.s32.totalorder %s157, %s158
    %p170 = scmp.eq.s32.totalorder %s22, 1
    %p171 = por %p169, %p170
    %p173 = scmp.ne.s32.totalorder %s158, %s172
    %p174 = scmp.eq.s32.totalorder %s22, 0
    %p175 = por %p173, %p174
    %s177 = sadd.s32 %s176, 1
    %p180 = scmp.eq.s32.totalorder %s16, 1
    %p181 = scmp.ne.s32.totalorder %s176, %s178
    %p182 = scmp.eq.s32.totalorder %s16, 0
    %p183 = por %p181, %p182
    %p184 = scmp.ne.s32.totalorder %s176, %s178
    %p185 = scmp.eq.s32.totalorder %s21, 1
    %p186 = por %p184, %p185
    %p187 = scmp.ne.s32.totalorder %s178, %s179
    %p188 = scmp.eq.s32.totalorder %s21, 0
    %p189 = por %p187, %p188
    %p190 = scmp.ne.s32.totalorder %s178, %s179
    %p191 = scmp.eq.s32.totalorder %s22, 1
    %p192 = por %p190, %p191
    %p194 = scmp.ne.s32.totalorder %s179, %s193
    %p195 = scmp.eq.s32.totalorder %s22, 0
    %p196 = por %p194, %p195
    %s198 = sadd.s32 %s197, 1
    %p201 = scmp.eq.s32.totalorder %s16, 1
    %p202 = scmp.ne.s32.totalorder %s197, %s199
    %p203 = scmp.eq.s32.totalorder %s16, 0
    %p204 = por %p202, %p203
    %p205 = scmp.ne.s32.totalorder %s197, %s199
    %p206 = scmp.eq.s32.totalorder %s21, 1
    %p207 = por %p205, %p206
    %p208 = scmp.ne.s32.totalorder %s199, %s200
    %p209 = scmp.eq.s32.totalorder %s21, 0
    %p210 = por %p208, %p209
    %p211 = scmp.ne.s32.totalorder %s199, %s200
    %p212 = scmp.eq.s32.totalorder %s22, 1
    %p213 = por %p211, %p212
    %p215 = scmp.ne.s32.totalorder %s200, %s214
    %p216 = scmp.eq.s32.totalorder %s22, 0
    %p217 = por %p215, %p216
    %s219 = sadd.s32 %s218, 1
    %p222 = scmp.eq.s32.totalorder %s16, 1
    %p223 = scmp.ne.s32.totalorder %s218, %s220
    %p224 = scmp.eq.s32.totalorder %s16, 0
    %p225 = por %p223, %p224
    %p226 = scmp.ne.s32.totalorder %s218, %s220
    %p227 = scmp.eq.s32.totalorder %s21, 1
    %p228 = por %p226, %p227
    %p229 = scmp.ne.s32.totalorder %s220, %s221
    %p230 = scmp.eq.s32.totalorder %s21, 0
    %p231 = por %p229, %p230
    %p232 = scmp.ne.s32.totalorder %s220, %s221
    %p233 = scmp.eq.s32.totalorder %s22, 1
    %p234 = por %p232, %p233
    %p236 = scmp.ne.s32.totalorder %s221, %s235
    %p237 = scmp.eq.s32.totalorder %s22, 0
    %p238 = por %p236, %p237
    %s239 = ssub.s32 %s16, %s23
    %p240 = scmp.eq.s32.totalorder %s239, 0
    %s242 = sadd.s32 %s241, 1
    %s243 = scalar_select %p240, %s241, %s242
    %p246 = pneg %p240
    %p247 = scmp.eq.s32.totalorder %s16, 1
    %p248 = por %p246, %p247
    %p249 = scmp.ne.s32.totalorder %s241, %s244
    %p250 = scmp.eq.s32.totalorder %s16, 0
    %p251 = por %p249, %p250
    %p252 = scmp.ne.s32.totalorder %s241, %s244
    %p253 = scmp.eq.s32.totalorder %s21, 1
    %p254 = por %p252, %p253
    %p255 = scmp.ne.s32.totalorder %s244, %s245
    %p256 = scmp.eq.s32.totalorder %s21, 0
    %p257 = por %p255, %p256
    %p258 = scmp.ne.s32.totalorder %s244, %s245
    %p259 = scmp.eq.s32.totalorder %s22, 1
    %p260 = por %p258, %p259
    %p262 = scmp.ne.s32.totalorder %s245, %s261
    %p263 = scmp.eq.s32.totalorder %s22, 0
    %p264 = por %p262, %p263
    %p265 = scmp.le.s32.totalorder 1, %s16
    %p266 = scmp.lt.s32.totalorder %s16, 3
    %p267 = pnand %p265, %p266
    %p268 = pneg %p267
    // Predicated region
    $region9: #{network_wrapper_forward.1} parent=5 // pred_check
      _
    $region10: #{network_wrapper_forward.1} parent=5 // pred_check_branch
      %270 = sbr.rel (%p267) target = $region12
    $region11: #{network_wrapper_forward.1} parent=5 // pred_region
      %s271 = ssub.s32 %s16, 1
      // Predicated region
      $region13: #{network_wrapper_forward.1} parent=11 // pred_check
        %p272 = pneg %p63
      $region14: #{network_wrapper_forward.1} parent=11 // pred_check_branch
        %274 = sbr.rel (%p272) target = $region16
      $region15: #{network_wrapper_forward.1} parent=11 // pred_region
        _
      $region16: #{network_wrapper_forward.1} parent=11 // pred_fallthru
        _
      // Predicated region
      $region17: #{network_wrapper_forward.1} parent=11 // pred_check
        %p275 = pneg %p84
      $region18: #{network_wrapper_forward.1} parent=11 // pred_check_branch
        %277 = sbr.rel (%p275) target = $region20
      $region19: #{network_wrapper_forward.1} parent=11 // pred_region
        _
      $region20: #{network_wrapper_forward.1} parent=11 // pred_fallthru
        _
      // Predicated region
      $region21: #{network_wrapper_forward.1} parent=11 // pred_check
        %p278 = pneg %p105
      $region22: #{network_wrapper_forward.1} parent=11 // pred_check_branch
        %280 = sbr.rel (%p278) target = $region24
      $region23: #{network_wrapper_forward.1} parent=11 // pred_region
        _
      $region24: #{network_wrapper_forward.1} parent=11 // pred_fallthru
        _
      // Predicated region
      $region25: #{network_wrapper_forward.1} parent=11 // pred_check
        %p281 = pneg %p126
      $region26: #{network_wrapper_forward.1} parent=11 // pred_check_branch
        %283 = sbr.rel (%p281) target = $region28
      $region27: #{network_wrapper_forward.1} parent=11 // pred_region
        _
      $region28: #{network_wrapper_forward.1} parent=11 // pred_fallthru
        _
      // Predicated region
      $region29: #{network_wrapper_forward.1} parent=11 // pred_check
        %p284 = pneg %p147
      $region30: #{network_wrapper_forward.1} parent=11 // pred_check_branch
        %286 = sbr.rel (%p284) target = $region32
      $region31: #{network_wrapper_forward.1} parent=11 // pred_region
        _
      $region32: #{network_wrapper_forward.1} parent=11 // pred_fallthru
        _
      // Predicated region
      $region33: #{network_wrapper_forward.1} parent=11 // pred_check
        %p287 = pneg %p168
      $region34: #{network_wrapper_forward.1} parent=11 // pred_check_branch
        %289 = sbr.rel (%p287) target = $region36
      $region35: #{network_wrapper_forward.1} parent=11 // pred_region
        _
      $region36: #{network_wrapper_forward.1} parent=11 // pred_fallthru
        _
      // Predicated region
      $region37: #{network_wrapper_forward.1} parent=11 // pred_check
        %p290 = pneg %p189
      $region38: #{network_wrapper_forward.1} parent=11 // pred_check_branch
        %292 = sbr.rel (%p290) target = $region40
      $region39: #{network_wrapper_forward.1} parent=11 // pred_region
        _
      $region40: #{network_wrapper_forward.1} parent=11 // pred_fallthru
        _
      // Predicated region
      $region41: #{network_wrapper_forward.1} parent=11 // pred_check
        %p293 = pneg %p210
      $region42: #{network_wrapper_forward.1} parent=11 // pred_check_branch
        %295 = sbr.rel (%p293) target = $region44
      $region43: #{network_wrapper_forward.1} parent=11 // pred_region
        _
      $region44: #{network_wrapper_forward.1} parent=11 // pred_fallthru
        _
      // Predicated region
      $region45: #{network_wrapper_forward.1} parent=11 // pred_check
        %p296 = pneg %p231
      $region46: #{network_wrapper_forward.1} parent=11 // pred_check_branch
        %298 = sbr.rel (%p296) target = $region48
      $region47: #{network_wrapper_forward.1} parent=11 // pred_region
        _
      $region48: #{network_wrapper_forward.1} parent=11 // pred_fallthru
        _
    $region12: #{network_wrapper_forward.1} parent=5 // pred_fallthru
      _
    %p299 = scmp.lt.s32.totalorder %s16, 2
    // Predicated region
    $region49: #{network_wrapper_forward.1} parent=5 // pred_check
      %p300 = pneg %p299
    $region50: #{network_wrapper_forward.1} parent=5 // pred_check_branch
      %302 = sbr.rel (%p300) target = $region52
    $region51: #{network_wrapper_forward.1} parent=5 // pred_region
      // Predicated region
      $region53: #{network_wrapper_forward.1} parent=51 // pred_check
        %p303 = pneg %p36
      $region54: #{network_wrapper_forward.1} parent=51 // pred_check_branch
        %305 = sbr.rel (%p303) target = $region56
      $region55: #{network_wrapper_forward.1} parent=51 // pred_region
        %s306 = smul.u32 8, %s16
        %p307 = scmp.lt.s32.totalorder %s306, 15
        %s308 = scalar_select %p307, %s306, 15
        %s309 = smul.addr %s308, 4
        %s310 = scalar_lea.vmem %s0, %s309
        %s311 = smul.u32 8, %s16
      $region56: #{network_wrapper_forward.1} parent=51 // pred_fallthru
        _
    $region52: #{network_wrapper_forward.1} parent=5 // pred_fallthru
      _
    %p312 = scmp.le.s32.totalorder 1, %s16
    %p313 = scmp.lt.s32.totalorder %s16, 3
    %p314 = pnand %p312, %p313
    %p315 = pneg %p314
    // Predicated region
    $region57: #{network_wrapper_forward.1} parent=5 // pred_check
      _
    $region58: #{network_wrapper_forward.1} parent=5 // pred_check_branch
      %317 = sbr.rel (%p314) target = $region60
    $region59: #{network_wrapper_forward.1} parent=5 // pred_region
      %s318 = ssub.s32 %s16, 1
      %s319 = smul.u32 8, %s21
      %p320 = scmp.lt.s32.totalorder %s319, 15
      %s321 = scalar_select %p320, %s319, 15
      %s322 = smul.addr %s321, 4
      %s323 = scalar_lea.vmem %s0, %s322
      %p324 = pneg %p42
      %p325 = pneg %p39
      %p326 = pneg %p63
      %p327 = pneg %p60
      %p328 = pneg %p84
      %p329 = pneg %p81
      %p330 = pneg %p105
      %p331 = pneg %p102
      %p332 = pneg %p126
      %p333 = pneg %p123
      %p334 = pneg %p147
      %p335 = pneg %p144
      %p336 = pneg %p168
      %p337 = pneg %p165
      %p338 = pneg %p189
      %p339 = pneg %p186
      %p340 = pneg %p210
      %p341 = pneg %p207
      %p342 = pneg %p231
      %p343 = pneg %p228
      %p344 = pneg %p257
      %p345 = pneg %p254
      %s346 = smul.u32 8, %s21
      %p347 = scmp.lt.s32.totalorder %s346, 15
      %s348 = scalar_select %p347, %s346, 15
      %s349 = smul.addr %s348, 4
      %s350 = scalar_lea.vmem %s10, %s349
      %s351 = smul.u32 8, %s21
      %p352 = scmp.lt.s32.totalorder %s351, 15
      %s353 = scalar_select %p352, %s351, 15
      %s354 = smul.addr %s353, 4
      %s355 = scalar_lea.vmem %s0, %s354
      %s356 = smul.u32 8, %s21
      %s357 = smul.u32 8, %s21
      %p358 = scmp.lt.s32.totalorder %s357, 15
      %s359 = scalar_select %p358, %s357, 15
      %s360 = smul.addr %s359, 4
      %s361 = scalar_lea.vmem %s10, %s360
      %s362 = smul.u32 8, %s21
      %v364 = vld [vmem:[%s355] sm:$0xf]
      %v365 = vld [vmem:[%s355 + $0x4] sm:$0xf]
      %v366 = vld [vmem:[%s355 + $0x8] sm:$0xf]
      %v367 = vld [vmem:[%s355 + $0xc] sm:$0xf]
      %v368 = vld [vmem:[%s355 + $0x10] sm:$0xf]
      %v369 = vld [vmem:[%s355 + $0x14] sm:$0xf]
      %v370 = vld [vmem:[%s355 + $0x18] sm:$0xf]
      %v371 = vld [vmem:[%s355 + $0x1c] sm:$0xf]
      %v372 = vld [vmem:[%s1] sm:$0xf]
      %v373 = vld [vmem:[%s1 + $0x4] sm:$0xf]
      %v374 = vld [vmem:[%s2] sm:$0x1]
      %v376 = vlaneseq
      %v377 = vshrl.u32 %v376, 7
      %v378 = vsub.s32 0, %v377
      %v379 = vrot.slane %v374, %v378
      %v389 = vunpack.c.l.b16 %v364
      %v390 = vunpack.c.l.b16 %v365
      %v391 = vunpack.c.l.b16 %v366
      %v392 = vunpack.c.l.b16 %v367
      %v393 = vunpack.c.l.b16 %v368
      %v394 = vunpack.c.l.b16 %v369
      %v395 = vunpack.c.l.b16 %v370
      %v396 = vunpack.c.l.b16 %v371
      %v397 = vpack.c.b16 %v390, %v389
      %v398 = vpack.c.b16 %v392, %v391
      %v399 = vpack.c.b16 %v394, %v393
      %v400 = vpack.c.b16 %v396, %v395
      %v403 = vunpack.c.l.b16 %v372
      %v404 = vunpack.c.l.b16 %v373
      %v405 = vpack.c.b16 %v404, %v403
      %vm407 = vcmask 130048
      %v409 = vsel %vm407, %v397, 0
      %v412 = vsel %vm407, %v398, 0
      %v415 = vsel %vm407, %v399, 0
      %v418 = vsel %vm407, %v400, 0
      %420 = vmatprep.subr.bf16.mxu0 0
      %421 = vmatpush1.bf16.msra.mxu0 0
      %422 = vmatprep.subr.bf16.mxu0 0
      %423 = vmatpush1.bf16.msra.mxu0 0
      %424 = vmatprep.subr.bf16.mxu0 0
      %425 = vmatpush1.bf16.msra.mxu0 0
      %426 = vmatprep.subr.bf16.mxu0 0
      %427 = vmatpush1.bf16.msra.mxu0 0
      %428 = vmatprep.subr.bf16.mxu0 0
      %429 = vmatpush1.bf16.msra.mxu0 0
      %430 = vmatprep.subr.bf16.mxu0 0
      %431 = vmatpush1.bf16.msra.mxu0 0
      %432 = vmatprep.subr.bf16.mxu0 0
      %433 = vmatpush1.bf16.msra.mxu0 0
      %434 = vmatprep.subr.bf16.mxu0 0
      %435 = vmatpush1.bf16.msra.mxu0 %v405
      %436 = vmatprep.subr.bf16.mxu0 0
      %437 = vmatpush2.bf16.msra.mxu0 0
      %438 = vmatprep.subr.bf16.mxu0 0
      %439 = vmatpush2.bf16.msra.mxu0 0
      %440 = vmatprep.subr.bf16.mxu0 0
      %441 = vmatpush2.bf16.msra.mxu0 0
      %442 = vmatprep.subr.bf16.mxu0 0
      %443 = vmatpush2.bf16.msra.mxu0 0
      %444 = vmatprep.subr.bf16.mxu0 0
      %445 = vmatpush2.bf16.msra.mxu0 0
      %446 = vmatprep.subr.bf16.mxu0 0
      %447 = vmatpush2.bf16.msra.mxu0 0
      %448 = vmatprep.subr.bf16.mxu0 0
      %449 = vmatpush2.bf16.msra.mxu0 0
      %450 = vmatprep.subr.bf16.mxu0 0
      %451 = vmatpush2.bf16.msra.mxu0 0
      %452 = vmatprep.mubr.bf16.mxu0 0
      %453 = vmatmul.mubr.bf16.gmra.mxu0 %v409
      %v454 = vpop.f32.mrf.mxu0
      %v455 = vadd.f32 %v379, %v454
      %v456 = vpop.f32.mrf.mxu0
      %v457 = vpop.f32.mrf.mxu0
      %v458 = vadd.f32 %v379, %v457
      %v459 = vpop.f32.mrf.mxu0
      %460 = vmatprep.mubr.bf16.mxu0 0
      %461 = vmatmul.mubr.bf16.gmra.mxu0 %v412
      %v462 = vpop.f32.mrf.mxu0
      %v463 = vadd.f32 %v379, %v462
      %v464 = vpop.f32.mrf.mxu0
      %v465 = vpop.f32.mrf.mxu0
      %v466 = vadd.f32 %v379, %v465
      %v467 = vpop.f32.mrf.mxu0
      %468 = vmatprep.mubr.bf16.mxu0 0
      %469 = vmatmul.mubr.bf16.gmra.mxu0 %v415
      %v470 = vpop.f32.mrf.mxu0
      %v471 = vadd.f32 %v379, %v470
      %v472 = vpop.f32.mrf.mxu0
      %v473 = vpop.f32.mrf.mxu0
      %v474 = vadd.f32 %v379, %v473
      %v475 = vpop.f32.mrf.mxu0
      %476 = vmatprep.mubr.bf16.mxu0 0
      %477 = vmatmul.mubr.bf16.gmra.mxu0 %v418
      %v478 = vpop.f32.mrf.mxu0
      %v479 = vadd.f32 %v379, %v478
      %v480 = vpop.f32.mrf.mxu0
      %v481 = vpop.f32.mrf.mxu0
      %v482 = vadd.f32 %v379, %v481
      %v483 = vpop.f32.mrf.mxu0
      %484 = vdwg.mxu0
      %v485 = vmax.f32 %v455, 0.0
      %v486 = vmax.f32 %v458, 0.0
      %v487 = vmax.f32 %v463, 0.0
      %v488 = vmax.f32 %v466, 0.0
      %v489 = vmax.f32 %v471, 0.0
      %v490 = vmax.f32 %v474, 0.0
      %v491 = vmax.f32 %v479, 0.0
      %v492 = vmax.f32 %v482, 0.0
      %vm493 = vcmask 523264
      %v494 = vsel %vm493, %v485, 0.0
      %495 = vadd.xlane.f32.xlu0 %v494
      %v496 = vpop.xlane.xlu0 %495
      %v497 = vsel %vm493, %v486, 0.0
      %498 = vadd.xlane.f32.xlu0 %v497
      %v499 = vpop.xlane.xlu0 %498
      %v500 = vsel %vm493, %v487, 0.0
      %501 = vadd.xlane.f32.xlu0 %v500
      %v502 = vpop.xlane.xlu0 %501
      %v503 = vsel %vm493, %v488, 0.0
      %504 = vadd.xlane.f32.xlu0 %v503
      %v505 = vpop.xlane.xlu0 %504
      %v506 = vsel %vm493, %v489, 0.0
      %507 = vadd.xlane.f32.xlu0 %v506
      %v508 = vpop.xlane.xlu0 %507
      %v509 = vsel %vm493, %v490, 0.0
      %510 = vadd.xlane.f32.xlu0 %v509
      %v511 = vpop.xlane.xlu0 %510
      %v512 = vsel %vm493, %v491, 0.0
      %513 = vadd.xlane.f32.xlu0 %v512
      %v514 = vpop.xlane.xlu0 %513
      %v515 = vsel %vm493, %v492, 0.0
      %516 = vadd.xlane.f32.xlu0 %v515
      %v517 = vpop.xlane.xlu0 %516
      %v518 = vrcp.pop 64.0
      %v519 = vmul.f32 %v496, %v518
      %v520 = vmul.f32 %v499, %v518
      %v521 = vmul.f32 %v502, %v518
      %v522 = vmul.f32 %v505, %v518
      %v523 = vmul.f32 %v508, %v518
      %v524 = vmul.f32 %v511, %v518
      %v525 = vmul.f32 %v514, %v518
      %v526 = vmul.f32 %v517, %v518
      %v527 = vsub.f32 %v485, %v519
      %v528 = vsub.f32 %v486, %v520
      %v529 = vsub.f32 %v487, %v521
      %v530 = vsub.f32 %v488, %v522
      %v531 = vsub.f32 %v489, %v523
      %v532 = vsub.f32 %v490, %v524
      %v533 = vsub.f32 %v491, %v525
      %v534 = vsub.f32 %v492, %v526
      %v535 = vmul.f32 %v527, %v527
      %v536 = vmul.f32 %v528, %v528
      %v537 = vmul.f32 %v529, %v529
      %v538 = vmul.f32 %v530, %v530
      %v539 = vmul.f32 %v531, %v531
      %v540 = vmul.f32 %v532, %v532
      %v541 = vmul.f32 %v533, %v533
      %v542 = vmul.f32 %v534, %v534
      %v543 = vsel %vm493, %v535, 0.0
      %544 = vadd.xlane.f32.xlu0 %v543
      %v545 = vpop.xlane.xlu0 %544
      %v546 = vsel %vm493, %v536, 0.0
      %547 = vadd.xlane.f32.xlu0 %v546
      %v548 = vpop.xlane.xlu0 %547
      %v549 = vsel %vm493, %v537, 0.0
      %550 = vadd.xlane.f32.xlu0 %v549
      %v551 = vpop.xlane.xlu0 %550
      %v552 = vsel %vm493, %v538, 0.0
      %553 = vadd.xlane.f32.xlu0 %v552
      %v554 = vpop.xlane.xlu0 %553
      %v555 = vsel %vm493, %v539, 0.0
      %556 = vadd.xlane.f32.xlu0 %v555
      %v557 = vpop.xlane.xlu0 %556
      %v558 = vsel %vm493, %v540, 0.0
      %559 = vadd.xlane.f32.xlu0 %v558
      %v560 = vpop.xlane.xlu0 %559
      %v561 = vsel %vm493, %v541, 0.0
      %562 = vadd.xlane.f32.xlu0 %v561
      %v563 = vpop.xlane.xlu0 %562
      %v564 = vsel %vm493, %v542, 0.0
      %565 = vadd.xlane.f32.xlu0 %v564
      %v566 = vpop.xlane.xlu0 %565
      %v567 = vmul.f32 %v545, %v518
      %v568 = vmul.f32 %v548, %v518
      %v569 = vmul.f32 %v551, %v518
      %v570 = vmul.f32 %v554, %v518
      %v571 = vmul.f32 %v557, %v518
      %v572 = vmul.f32 %v560, %v518
      %v573 = vmul.f32 %v563, %v518
      %v574 = vmul.f32 %v566, %v518
      %v575 = vadd.f32 %v567, 1e-05
      %v576 = vadd.f32 %v568, 1e-05
      %v577 = vadd.f32 %v569, 1e-05
      %v578 = vadd.f32 %v570, 1e-05
      %v579 = vadd.f32 %v571, 1e-05
      %v580 = vadd.f32 %v572, 1e-05
      %v581 = vadd.f32 %v573, 1e-05
      %v582 = vadd.f32 %v574, 1e-05
      %v583 = vrsqrt.pop %v575
      %v584 = vrsqrt.pop %v576
      %v585 = vrsqrt.pop %v577
      %v586 = vrsqrt.pop %v578
      %v587 = vrsqrt.pop %v579
      %v588 = vrsqrt.pop %v580
      %v589 = vrsqrt.pop %v581
      %v590 = vrsqrt.pop %v582
      %v591 = vmul.f32 %v527, %v583
      %v592 = vmul.f32 %v528, %v584
      %v593 = vmul.f32 %v529, %v585
      %v594 = vmul.f32 %v530, %v586
      %v595 = vmul.f32 %v531, %v587
      %v596 = vmul.f32 %v532, %v588
      %v597 = vmul.f32 %v533, %v589
      %v598 = vmul.f32 %v534, %v590
      %v599 = vld [vmem:[%s3] sm:$0x1]
      %v601 = vlaneseq
      %v602 = vshrl.u32 %v601, 7
      %v603 = vsub.s32 0, %v602
      %v604 = vrot.slane %v599, %v603
      %v606 = vmul.f32 %v591, %v604
      %v607 = vmul.f32 %v592, %v604
      %v608 = vmul.f32 %v593, %v604
      %v609 = vmul.f32 %v594, %v604
      %v610 = vmul.f32 %v595, %v604
      %v611 = vmul.f32 %v596, %v604
      %v612 = vmul.f32 %v597, %v604
      %v613 = vmul.f32 %v598, %v604
      %v614 = vld [vmem:[%s4] sm:$0x1]
      %v616 = vlaneseq
      %v617 = vshrl.u32 %v616, 7
      %v618 = vsub.s32 0, %v617
      %v619 = vrot.slane %v614, %v618
      %v621 = vadd.f32 %v606, %v619
      %v622 = vadd.f32 %v607, %v619
      %v623 = vadd.f32 %v608, %v619
      %v624 = vadd.f32 %v609, %v619
      %v625 = vadd.f32 %v610, %v619
      %v626 = vadd.f32 %v611, %v619
      %v627 = vadd.f32 %v612, %v619
      %v628 = vadd.f32 %v613, %v619
      %v629 = vpack.c.bf16 %v622, %v621
      %v630 = vpack.c.bf16 %v624, %v623
      %v631 = vpack.c.bf16 %v626, %v625
      %v632 = vpack.c.bf16 %v628, %v627
      %v633 = vld [vmem:[%s5] sm:$0xf]
      %v634 = vld [vmem:[%s5 + $0x4] sm:$0xf]
      %v635 = vld [vmem:[%s5 + $0x8] sm:$0xf]
      %v636 = vld [vmem:[%s5 + $0xc] sm:$0xf]
      %v637 = vld [vmem:[%s5 + $0x10] sm:$0xf]
      %v638 = vld [vmem:[%s5 + $0x14] sm:$0xf]
      %v639 = vld [vmem:[%s5 + $0x18] sm:$0xf]
      %v640 = vld [vmem:[%s5 + $0x1c] sm:$0xf]
      %v649 = vunpack.c.l.b16 %v633
      %v650 = vunpack.c.l.b16 %v634
      %v651 = vunpack.c.l.b16 %v635
      %v652 = vunpack.c.l.b16 %v636
      %v653 = vunpack.c.l.b16 %v637
      %v654 = vunpack.c.l.b16 %v638
      %v655 = vunpack.c.l.b16 %v639
      %v656 = vunpack.c.l.b16 %v640
      %v657 = vpack.c.b16 %v650, %v649
      %v658 = vpack.c.b16 %v652, %v651
      %v659 = vpack.c.b16 %v654, %v653
      %v660 = vpack.c.b16 %v656, %v655
      %v666 = vsel %vm493, %v629, 0
      %v669 = vsel %vm493, %v630, 0
      %v672 = vsel %vm493, %v631, 0
      %v675 = vsel %vm493, %v632, 0
      %677 = vmatprep.subr.bf16.mxu0 0
      %678 = vmatpush1.bf16.msra.mxu0 0
      %679 = vmatprep.subr.bf16.mxu0 0
      %680 = vmatpush1.bf16.msra.mxu0 0
      %681 = vmatprep.subr.bf16.mxu0 0
      %682 = vmatpush1.bf16.msra.mxu0 0
      %683 = vmatprep.subr.bf16.mxu0 0
      %684 = vmatpush1.bf16.msra.mxu0 0
      %685 = vmatprep.subr.bf16.mxu0 0
      %686 = vmatpush1.bf16.msra.mxu0 %v660
      %687 = vmatprep.subr.bf16.mxu0 0
      %688 = vmatpush1.bf16.msra.mxu0 %v659
      %689 = vmatprep.subr.bf16.mxu0 0
      %690 = vmatpush1.bf16.msra.mxu0 %v658
      %691 = vmatprep.subr.bf16.mxu0 0
      %692 = vmatpush1.bf16.msra.mxu0 %v657
      %693 = vmatprep.subr.bf16.mxu0 0
      %694 = vmatpush2.bf16.msra.mxu0 0
      %695 = vmatprep.subr.bf16.mxu0 0
      %696 = vmatpush2.bf16.msra.mxu0 0
      %697 = vmatprep.subr.bf16.mxu0 0
      %698 = vmatpush2.bf16.msra.mxu0 0
      %699 = vmatprep.subr.bf16.mxu0 0
      %700 = vmatpush2.bf16.msra.mxu0 0
      %701 = vmatprep.subr.bf16.mxu0 0
      %702 = vmatpush2.bf16.msra.mxu0 0
      %703 = vmatprep.subr.bf16.mxu0 0
      %704 = vmatpush2.bf16.msra.mxu0 0
      %705 = vmatprep.subr.bf16.mxu0 0
      %706 = vmatpush2.bf16.msra.mxu0 0
      %707 = vmatprep.subr.bf16.mxu0 0
      %708 = vmatpush2.bf16.msra.mxu0 0
      %709 = vmatprep.mubr.bf16.mxu0 0
      %710 = vmatmul.mubr.bf16.gmra.mxu0 %v666
      %v711 = vpop.f32.mrf.mxu0
      %v712 = vadd.f32 0.0, %v711
      %v713 = vpop.f32.mrf.mxu0
      %v714 = vpop.f32.mrf.mxu0
      %v715 = vadd.f32 0.0, %v714
      %v716 = vpop.f32.mrf.mxu0
      %717 = vmatprep.mubr.bf16.mxu0 0
      %718 = vmatmul.mubr.bf16.gmra.mxu0 %v669
      %v719 = vpop.f32.mrf.mxu0
      %v720 = vadd.f32 0.0, %v719
      %v721 = vpop.f32.mrf.mxu0
      %v722 = vpop.f32.mrf.mxu0
      %v723 = vadd.f32 0.0, %v722
      %v724 = vpop.f32.mrf.mxu0
      %725 = vmatprep.mubr.bf16.mxu0 0
      %726 = vmatmul.mubr.bf16.gmra.mxu0 %v672
      %v727 = vpop.f32.mrf.mxu0
      %v728 = vadd.f32 0.0, %v727
      %v729 = vpop.f32.mrf.mxu0
      %v730 = vpop.f32.mrf.mxu0
      %v731 = vadd.f32 0.0, %v730
      %v732 = vpop.f32.mrf.mxu0
      %733 = vmatprep.mubr.bf16.mxu0 0
      %734 = vmatmul.mubr.bf16.gmra.mxu0 %v675
      %v735 = vpop.f32.mrf.mxu0
      %v736 = vadd.f32 0.0, %v735
      %v737 = vpop.f32.mrf.mxu0
      %v738 = vpop.f32.mrf.mxu0
      %v739 = vadd.f32 0.0, %v738
      %v740 = vpop.f32.mrf.mxu0
      %741 = vdwg.mxu0
      %v742 = vpack.c.bf16 %v715, %v712
      %v743 = vpack.c.bf16 %v723, %v720
      %v744 = vpack.c.bf16 %v731, %v728
      %v745 = vpack.c.bf16 %v739, %v736
      %v746 = vld [vmem:[%s6] sm:$0xff]
      %v747 = vld [vmem:[%s6 + $0x8] sm:$0xff]
      %v748 = vld [vmem:[%s6 + $0x10] sm:$0xff]
      %v749 = vld [vmem:[%s6 + $0x18] sm:$0xff]
      %v750 = vld [vmem:[%s6 + $0x20] sm:$0xff]
      %v751 = vld [vmem:[%s6 + $0x28] sm:$0xff]
      %v752 = vld [vmem:[%s6 + $0x30] sm:$0xff]
      %v753 = vld [vmem:[%s6 + $0x38] sm:$0xff]
      %v754 = vld [vmem:[%s6 + $0x40] sm:$0xff]
      %v755 = vld [vmem:[%s6 + $0x48] sm:$0xff]
      %v756 = vld [vmem:[%s6 + $0x50] sm:$0xff]
      %v757 = vld [vmem:[%s6 + $0x58] sm:$0xff]
      %v758 = vld [vmem:[%s6 + $0x60] sm:$0xff]
      %v759 = vld [vmem:[%s6 + $0x68] sm:$0xff]
      %v760 = vld [vmem:[%s6 + $0x70] sm:$0xff]
      %v761 = vld [vmem:[%s6 + $0x78] sm:$0xff]
      %v778 = vunpack.c.l.b16 %v746
      %v779 = vunpack.c.h.b16 %v746
      %v780 = vunpack.c.l.b16 %v747
      %v781 = vunpack.c.h.b16 %v747
      %v782 = vunpack.c.l.b16 %v748
      %v783 = vunpack.c.h.b16 %v748
      %v784 = vunpack.c.l.b16 %v749
      %v785 = vunpack.c.h.b16 %v749
      %v786 = vunpack.c.l.b16 %v750
      %v787 = vunpack.c.h.b16 %v750
      %v788 = vunpack.c.l.b16 %v751
      %v789 = vunpack.c.h.b16 %v751
      %v790 = vunpack.c.l.b16 %v752
      %v791 = vunpack.c.h.b16 %v752
      %v792 = vunpack.c.l.b16 %v753
      %v793 = vunpack.c.h.b16 %v753
      %v794 = vunpack.c.l.b16 %v754
      %v795 = vunpack.c.h.b16 %v754
      %v796 = vunpack.c.l.b16 %v755
      %v797 = vunpack.c.h.b16 %v755
      %v798 = vunpack.c.l.b16 %v756
      %v799 = vunpack.c.h.b16 %v756
      %v800 = vunpack.c.l.b16 %v757
      %v801 = vunpack.c.h.b16 %v757
      %v802 = vunpack.c.l.b16 %v758
      %v803 = vunpack.c.h.b16 %v758
      %v804 = vunpack.c.l.b16 %v759
      %v805 = vunpack.c.h.b16 %v759
      %v806 = vunpack.c.l.b16 %v760
      %v807 = vunpack.c.h.b16 %v760
      %v808 = vunpack.c.l.b16 %v761
      %v809 = vunpack.c.h.b16 %v761
      %v810 = vpack.c.b16 %v780, %v778
      %v811 = vpack.c.b16 %v781, %v779
      %v812 = vpack.c.b16 %v784, %v782
      %v813 = vpack.c.b16 %v785, %v783
      %v814 = vpack.c.b16 %v788, %v786
      %v815 = vpack.c.b16 %v789, %v787
      %v816 = vpack.c.b16 %v792, %v790
      %v817 = vpack.c.b16 %v793, %v791
      %v818 = vpack.c.b16 %v796, %v794
      %v819 = vpack.c.b16 %v797, %v795
      %v820 = vpack.c.b16 %v800, %v798
      %v821 = vpack.c.b16 %v801, %v799
      %v822 = vpack.c.b16 %v804, %v802
      %v823 = vpack.c.b16 %v805, %v803
      %v824 = vpack.c.b16 %v808, %v806
      %v825 = vpack.c.b16 %v809, %v807
      %842 = vmatprep.subr.bf16.mxu0 %v825
      %843 = vmatpush1.bf16.msra.mxu0 %v824
      %844 = vmatprep.subr.bf16.mxu0 %v823
      %845 = vmatpush1.bf16.msra.mxu0 %v822
      %846 = vmatprep.subr.bf16.mxu0 %v821
      %847 = vmatpush1.bf16.msra.mxu0 %v820
      %848 = vmatprep.subr.bf16.mxu0 %v819
      %849 = vmatpush1.bf16.msra.mxu0 %v818
      %850 = vmatprep.subr.bf16.mxu0 %v817
      %851 = vmatpush1.bf16.msra.mxu0 %v816
      %852 = vmatprep.subr.bf16.mxu0 %v815
      %853 = vmatpush1.bf16.msra.mxu0 %v814
      %854 = vmatprep.subr.bf16.mxu0 %v813
      %855 = vmatpush1.bf16.msra.mxu0 %v812
      %856 = vmatprep.subr.bf16.mxu0 %v811
      %857 = vmatpush1.bf16.msra.mxu0 %v810
      %858 = vmatprep.subr.bf16.mxu0 0
      %859 = vmatpush2.bf16.msra.mxu0 0
      %860 = vmatprep.subr.bf16.mxu0 0
      %861 = vmatpush2.bf16.msra.mxu0 0
      %862 = vmatprep.subr.bf16.mxu0 0
      %863 = vmatpush2.bf16.msra.mxu0 0
      %864 = vmatprep.subr.bf16.mxu0 0
      %865 = vmatpush2.bf16.msra.mxu0 0
      %866 = vmatprep.subr.bf16.mxu0 0
      %867 = vmatpush2.bf16.msra.mxu0 0
      %868 = vmatprep.subr.bf16.mxu0 0
      %869 = vmatpush2.bf16.msra.mxu0 0
      %870 = vmatprep.subr.bf16.mxu0 0
      %871 = vmatpush2.bf16.msra.mxu0 0
      %872 = vmatprep.subr.bf16.mxu0 0
      %873 = vmatpush2.bf16.msra.mxu0 0
      %874 = vmatprep.mubr.bf16.mxu0 0
      %875 = vmatmul.mubr.bf16.gmra.mxu0 %v742
      %v876 = vpop.f32.mrf.mxu0
      %v877 = vadd.f32 0.0, %v876
      %v878 = vpop.f32.mrf.mxu0
      %v879 = vadd.f32 0.0, %v878
      %v880 = vpop.f32.mrf.mxu0
      %v881 = vadd.f32 0.0, %v880
      %v882 = vpop.f32.mrf.mxu0
      %v883 = vadd.f32 0.0, %v882
      %884 = vmatprep.mubr.bf16.mxu0 0
      %885 = vmatmul.mubr.bf16.gmra.mxu0 %v743
      %v886 = vpop.f32.mrf.mxu0
      %v887 = vadd.f32 0.0, %v886
      %v888 = vpop.f32.mrf.mxu0
      %v889 = vadd.f32 0.0, %v888
      %v890 = vpop.f32.mrf.mxu0
      %v891 = vadd.f32 0.0, %v890
      %v892 = vpop.f32.mrf.mxu0
      %v893 = vadd.f32 0.0, %v892
      %894 = vmatprep.mubr.bf16.mxu0 0
      %895 = vmatmul.mubr.bf16.gmra.mxu0 %v744
      %v896 = vpop.f32.mrf.mxu0
      %v897 = vadd.f32 0.0, %v896
      %v898 = vpop.f32.mrf.mxu0
      %v899 = vadd.f32 0.0, %v898
      %v900 = vpop.f32.mrf.mxu0
      %v901 = vadd.f32 0.0, %v900
      %v902 = vpop.f32.mrf.mxu0
      %v903 = vadd.f32 0.0, %v902
      %904 = vmatprep.mubr.bf16.mxu0 0
      %905 = vmatmul.mubr.bf16.gmra.mxu0 %v745
      %v906 = vpop.f32.mrf.mxu0
      %v907 = vadd.f32 0.0, %v906
      %v908 = vpop.f32.mrf.mxu0
      %v909 = vadd.f32 0.0, %v908
      %v910 = vpop.f32.mrf.mxu0
      %v911 = vadd.f32 0.0, %v910
      %v912 = vpop.f32.mrf.mxu0
      %v913 = vadd.f32 0.0, %v912
      %914 = vdwg.mxu0
      %v915 = vxor.u32 %v879, 2147483648
      %v916 = vxor.u32 %v883, 2147483648
      %v917 = vxor.u32 %v889, 2147483648
      %v918 = vxor.u32 %v893, 2147483648
      %v919 = vxor.u32 %v899, 2147483648
      %v920 = vxor.u32 %v903, 2147483648
      %v921 = vxor.u32 %v909, 2147483648
      %v922 = vxor.u32 %v913, 2147483648
      %v923 = vmul.f32 %v915, 1.442695
      %v924 = vpow.pop %v923
      %v925 = vmul.f32 %v916, 1.442695
      %v926 = vpow.pop %v925
      %v927 = vmul.f32 %v917, 1.442695
      %v928 = vpow.pop %v927
      %v929 = vmul.f32 %v918, 1.442695
      %v930 = vpow.pop %v929
      %v931 = vmul.f32 %v919, 1.442695
      %v932 = vpow.pop %v931
      %v933 = vmul.f32 %v920, 1.442695
      %v934 = vpow.pop %v933
      %v935 = vmul.f32 %v921, 1.442695
      %v936 = vpow.pop %v935
      %v937 = vmul.f32 %v922, 1.442695
      %v938 = vpow.pop %v937
      %v939 = vadd.f32 %v924, 1.0
      %v940 = vadd.f32 %v926, 1.0
      %v941 = vadd.f32 %v928, 1.0
      %v942 = vadd.f32 %v930, 1.0
      %v943 = vadd.f32 %v932, 1.0
      %v944 = vadd.f32 %v934, 1.0
      %v945 = vadd.f32 %v936, 1.0
      %v946 = vadd.f32 %v938, 1.0
      %v947 = vrcp.pop %v939
      %v948 = vmul.f32 1.0, %v947
      %v949 = vrcp.pop %v940
      %v950 = vmul.f32 1.0, %v949
      %v951 = vrcp.pop %v941
      %v952 = vmul.f32 1.0, %v951
      %v953 = vrcp.pop %v942
      %v954 = vmul.f32 1.0, %v953
      %v955 = vrcp.pop %v943
      %v956 = vmul.f32 1.0, %v955
      %v957 = vrcp.pop %v944
      %v958 = vmul.f32 1.0, %v957
      %v959 = vrcp.pop %v945
      %v960 = vmul.f32 1.0, %v959
      %v961 = vrcp.pop %v946
      %v962 = vmul.f32 1.0, %v961
      %v963 = vmul.f32 %v877, %v948
      %v964 = vmul.f32 %v881, %v950
      %v965 = vmul.f32 %v887, %v952
      %v966 = vmul.f32 %v891, %v954
      %v967 = vmul.f32 %v897, %v956
      %v968 = vmul.f32 %v901, %v958
      %v969 = vmul.f32 %v907, %v960
      %v970 = vmul.f32 %v911, %v962
      %v971 = vpack.c.bf16 %v964, %v963
      %v972 = vpack.c.bf16 %v966, %v965
      %v973 = vpack.c.bf16 %v968, %v967
      %v974 = vpack.c.bf16 %v970, %v969
      %v975 = vld [vmem:[%s7] sm:$0xf]
      %v976 = vld [vmem:[%s7 + $0x4] sm:$0xf]
      %v977 = vld [vmem:[%s7 + $0x8] sm:$0xf]
      %v978 = vld [vmem:[%s7 + $0xc] sm:$0xf]
      %v979 = vld [vmem:[%s7 + $0x10] sm:$0xf]
      %v980 = vld [vmem:[%s7 + $0x14] sm:$0xf]
      %v981 = vld [vmem:[%s7 + $0x18] sm:$0xf]
      %v982 = vld [vmem:[%s7 + $0x1c] sm:$0xf]
      %v983 = vld [vmem:[%s7 + $0x20] sm:$0xf]
      %v984 = vld [vmem:[%s7 + $0x24] sm:$0xf]
      %v985 = vld [vmem:[%s7 + $0x28] sm:$0xf]
      %v986 = vld [vmem:[%s7 + $0x2c] sm:$0xf]
      %v987 = vld [vmem:[%s7 + $0x30] sm:$0xf]
      %v988 = vld [vmem:[%s7 + $0x34] sm:$0xf]
      %v989 = vld [vmem:[%s7 + $0x38] sm:$0xf]
      %v990 = vld [vmem:[%s7 + $0x3c] sm:$0xf]
      %v991 = vld [vmem:[%s8] sm:$0x1]
      %v993 = vlaneseq
      %v994 = vshrl.u32 %v993, 7
      %v995 = vsub.s32 0, %v994
      %v996 = vrot.slane %v991, %v995
      %v1014 = vunpack.c.l.b16 %v975
      %v1015 = vunpack.c.l.b16 %v976
      %v1016 = vunpack.c.l.b16 %v977
      %v1017 = vunpack.c.l.b16 %v978
      %v1018 = vunpack.c.l.b16 %v979
      %v1019 = vunpack.c.l.b16 %v980
      %v1020 = vunpack.c.l.b16 %v981
      %v1021 = vunpack.c.l.b16 %v982
      %v1022 = vunpack.c.l.b16 %v983
      %v1023 = vunpack.c.l.b16 %v984
      %v1024 = vunpack.c.l.b16 %v985
      %v1025 = vunpack.c.l.b16 %v986
      %v1026 = vunpack.c.l.b16 %v987
      %v1027 = vunpack.c.l.b16 %v988
      %v1028 = vunpack.c.l.b16 %v989
      %v1029 = vunpack.c.l.b16 %v990
      %v1030 = vpack.c.b16 %v1015, %v1014
      %v1031 = vpack.c.b16 %v1017, %v1016
      %v1032 = vpack.c.b16 %v1019, %v1018
      %v1033 = vpack.c.b16 %v1021, %v1020
      %v1034 = vpack.c.b16 %v1023, %v1022
      %v1035 = vpack.c.b16 %v1025, %v1024
      %v1036 = vpack.c.b16 %v1027, %v1026
      %v1037 = vpack.c.b16 %v1029, %v1028
      %1046 = vmatprep.subr.bf16.mxu0 0
      %1047 = vmatpush1.bf16.msra.mxu0 %v1037
      %1048 = vmatprep.subr.bf16.mxu0 0
      %1049 = vmatpush1.bf16.msra.mxu0 %v1036
      %1050 = vmatprep.subr.bf16.mxu0 0
      %1051 = vmatpush1.bf16.msra.mxu0 %v1035
      %1052 = vmatprep.subr.bf16.mxu0 0
      %1053 = vmatpush1.bf16.msra.mxu0 %v1034
      %1054 = vmatprep.subr.bf16.mxu0 0
      %1055 = vmatpush1.bf16.msra.mxu0 %v1033
      %1056 = vmatprep.subr.bf16.mxu0 0
      %1057 = vmatpush1.bf16.msra.mxu0 %v1032
      %1058 = vmatprep.subr.bf16.mxu0 0
      %1059 = vmatpush1.bf16.msra.mxu0 %v1031
      %1060 = vmatprep.subr.bf16.mxu0 0
      %1061 = vmatpush1.bf16.msra.mxu0 %v1030
      %1062 = vmatprep.subr.bf16.mxu0 0
      %1063 = vmatpush2.bf16.msra.mxu0 0
      %1064 = vmatprep.subr.bf16.mxu0 0
      %1065 = vmatpush2.bf16.msra.mxu0 0
      %1066 = vmatprep.subr.bf16.mxu0 0
      %1067 = vmatpush2.bf16.msra.mxu0 0
      %1068 = vmatprep.subr.bf16.mxu0 0
      %1069 = vmatpush2.bf16.msra.mxu0 0
      %1070 = vmatprep.subr.bf16.mxu0 0
      %1071 = vmatpush2.bf16.msra.mxu0 0
      %1072 = vmatprep.subr.bf16.mxu0 0
      %1073 = vmatpush2.bf16.msra.mxu0 0
      %1074 = vmatprep.subr.bf16.mxu0 0
      %1075 = vmatpush2.bf16.msra.mxu0 0
      %1076 = vmatprep.subr.bf16.mxu0 0
      %1077 = vmatpush2.bf16.msra.mxu0 0
      %1078 = vmatprep.mubr.bf16.mxu0 0
      %1079 = vmatmul.mubr.bf16.gmra.mxu0 %v971
      %v1080 = vpop.f32.mrf.mxu0
      %v1081 = vadd.f32 %v996, %v1080
      %v1082 = vpop.f32.mrf.mxu0
      %v1083 = vpop.f32.mrf.mxu0
      %v1084 = vadd.f32 %v996, %v1083
      %v1085 = vpop.f32.mrf.mxu0
      %1086 = vmatprep.mubr.bf16.mxu0 0
      %1087 = vmatmul.mubr.bf16.gmra.mxu0 %v972
      %v1088 = vpop.f32.mrf.mxu0
      %v1089 = vadd.f32 %v996, %v1088
      %v1090 = vpop.f32.mrf.mxu0
      %v1091 = vpop.f32.mrf.mxu0
      %v1092 = vadd.f32 %v996, %v1091
      %v1093 = vpop.f32.mrf.mxu0
      %1094 = vmatprep.mubr.bf16.mxu0 0
      %1095 = vmatmul.mubr.bf16.gmra.mxu0 %v973
      %v1096 = vpop.f32.mrf.mxu0
      %v1097 = vadd.f32 %v996, %v1096
      %v1098 = vpop.f32.mrf.mxu0
      %v1099 = vpop.f32.mrf.mxu0
      %v1100 = vadd.f32 %v996, %v1099
      %v1101 = vpop.f32.mrf.mxu0
      %1102 = vmatprep.mubr.bf16.mxu0 0
      %1103 = vmatmul.mubr.bf16.gmra.mxu0 %v974
      %v1104 = vpop.f32.mrf.mxu0
      %v1105 = vadd.f32 %v996, %v1104
      %v1106 = vpop.f32.mrf.mxu0
      %v1107 = vpop.f32.mrf.mxu0
      %v1108 = vadd.f32 %v996, %v1107
      %v1109 = vpop.f32.mrf.mxu0
      %1110 = vdwg.mxu0
      %v1111 = vmax.f32 %v1081, 0.0
      %v1112 = vmax.f32 %v1084, 0.0
      %v1113 = vmax.f32 %v1089, 0.0
      %v1114 = vmax.f32 %v1092, 0.0
      %v1115 = vmax.f32 %v1097, 0.0
      %v1116 = vmax.f32 %v1100, 0.0
      %v1117 = vmax.f32 %v1105, 0.0
      %v1118 = vmax.f32 %v1108, 0.0
      %1127 = vrot.lane.b32.xlu0 %v485, 64
      %v1128 = vpop.permute.xlu0 %1127
      %1129 = vrot.lane.b32.xlu0 %v486, 64
      %v1130 = vpop.permute.xlu0 %1129
      %1131 = vrot.lane.b32.xlu0 %v487, 64
      %v1132 = vpop.permute.xlu0 %1131
      %1133 = vrot.lane.b32.xlu0 %v488, 64
      %v1134 = vpop.permute.xlu0 %1133
      %1135 = vrot.lane.b32.xlu0 %v489, 64
      %v1136 = vpop.permute.xlu0 %1135
      %1137 = vrot.lane.b32.xlu0 %v490, 64
      %v1138 = vpop.permute.xlu0 %1137
      %1139 = vrot.lane.b32.xlu0 %v491, 64
      %v1140 = vpop.permute.xlu0 %1139
      %1141 = vrot.lane.b32.xlu0 %v492, 64
      %v1142 = vpop.permute.xlu0 %1141
      %v1151 = vsel %vm493, %v485, %v1128
      %v1152 = vsel %vm493, %v486, %v1130
      %v1153 = vsel %vm493, %v487, %v1132
      %v1154 = vsel %vm493, %v488, %v1134
      %v1155 = vsel %vm493, %v489, %v1136
      %v1156 = vsel %vm493, %v490, %v1138
      %v1157 = vsel %vm493, %v491, %v1140
      %v1158 = vsel %vm493, %v492, %v1142
      %v1159 = vmul.f32 %v1151, %v1111
      %v1160 = vmul.f32 %v1152, %v1112
      %v1161 = vmul.f32 %v1153, %v1113
      %v1162 = vmul.f32 %v1154, %v1114
      %v1163 = vmul.f32 %v1155, %v1115
      %v1164 = vmul.f32 %v1156, %v1116
      %v1165 = vmul.f32 %v1157, %v1117
      %v1166 = vmul.f32 %v1158, %v1118
      %v1167 = vpack.c.bf16 %v1160, %v1159
      %v1168 = vpack.c.bf16 %v1162, %v1161
      %v1169 = vpack.c.bf16 %v1164, %v1163
      %v1170 = vpack.c.bf16 %v1166, %v1165
      %v1171 = vld [vmem:[%s9] sm:$0xf]
      %v1172 = vld [vmem:[%s9 + $0x4] sm:$0xf]
      %v1173 = vld [vmem:[%s9 + $0x8] sm:$0xf]
      %v1174 = vld [vmem:[%s9 + $0xc] sm:$0xf]
      %v1175 = vld [vmem:[%s9 + $0x10] sm:$0xf]
      %v1176 = vld [vmem:[%s9 + $0x14] sm:$0xf]
      %v1177 = vld [vmem:[%s9 + $0x18] sm:$0xf]
      %v1178 = vld [vmem:[%s9 + $0x1c] sm:$0xf]
      %v1179 = vld [vmem:[%s9 + $0x20] sm:$0xf]
      %v1180 = vld [vmem:[%s9 + $0x24] sm:$0xf]
      %v1181 = vld [vmem:[%s9 + $0x28] sm:$0xf]
      %v1182 = vld [vmem:[%s9 + $0x2c] sm:$0xf]
      %v1183 = vld [vmem:[%s9 + $0x30] sm:$0xf]
      %v1184 = vld [vmem:[%s9 + $0x34] sm:$0xf]
      %v1185 = vld [vmem:[%s9 + $0x38] sm:$0xf]
      %v1186 = vld [vmem:[%s9 + $0x3c] sm:$0xf]
      %v1203 = vunpack.c.l.b16 %v1171
      %v1204 = vunpack.c.l.b16 %v1172
      %v1205 = vunpack.c.l.b16 %v1173
      %v1206 = vunpack.c.l.b16 %v1174
      %v1207 = vunpack.c.l.b16 %v1175
      %v1208 = vunpack.c.l.b16 %v1176
      %v1209 = vunpack.c.l.b16 %v1177
      %v1210 = vunpack.c.l.b16 %v1178
      %v1211 = vunpack.c.l.b16 %v1179
      %v1212 = vunpack.c.l.b16 %v1180
      %v1213 = vunpack.c.l.b16 %v1181
      %v1214 = vunpack.c.l.b16 %v1182
      %v1215 = vunpack.c.l.b16 %v1183
      %v1216 = vunpack.c.l.b16 %v1184
      %v1217 = vunpack.c.l.b16 %v1185
      %v1218 = vunpack.c.l.b16 %v1186
      %v1219 = vpack.c.b16 %v1204, %v1203
      %v1220 = vpack.c.b16 %v1206, %v1205
      %v1221 = vpack.c.b16 %v1208, %v1207
      %v1222 = vpack.c.b16 %v1210, %v1209
      %v1223 = vpack.c.b16 %v1212, %v1211
      %v1224 = vpack.c.b16 %v1214, %v1213
      %v1225 = vpack.c.b16 %v1216, %v1215
      %v1226 = vpack.c.b16 %v1218, %v1217
      %1235 = vmatprep.subr.bf16.mxu0 0
      %1236 = vmatpush1.bf16.msra.mxu0 %v1226
      %1237 = vmatprep.subr.bf16.mxu0 0
      %1238 = vmatpush1.bf16.msra.mxu0 %v1225
      %1239 = vmatprep.subr.bf16.mxu0 0
      %1240 = vmatpush1.bf16.msra.mxu0 %v1224
      %1241 = vmatprep.subr.bf16.mxu0 0
      %1242 = vmatpush1.bf16.msra.mxu0 %v1223
      %1243 = vmatprep.subr.bf16.mxu0 0
      %1244 = vmatpush1.bf16.msra.mxu0 %v1222
      %1245 = vmatprep.subr.bf16.mxu0 0
      %1246 = vmatpush1.bf16.msra.mxu0 %v1221
      %1247 = vmatprep.subr.bf16.mxu0 0
      %1248 = vmatpush1.bf16.msra.mxu0 %v1220
      %1249 = vmatprep.subr.bf16.mxu0 0
      %1250 = vmatpush1.bf16.msra.mxu0 %v1219
      %1251 = vmatprep.subr.bf16.mxu0 0
      %1252 = vmatpush2.bf16.msra.mxu0 0
      %1253 = vmatprep.subr.bf16.mxu0 0
      %1254 = vmatpush2.bf16.msra.mxu0 0
      %1255 = vmatprep.subr.bf16.mxu0 0
      %1256 = vmatpush2.bf16.msra.mxu0 0
      %1257 = vmatprep.subr.bf16.mxu0 0
      %1258 = vmatpush2.bf16.msra.mxu0 0
      %1259 = vmatprep.subr.bf16.mxu0 0
      %1260 = vmatpush2.bf16.msra.mxu0 0
      %1261 = vmatprep.subr.bf16.mxu0 0
      %1262 = vmatpush2.bf16.msra.mxu0 0
      %1263 = vmatprep.subr.bf16.mxu0 0
      %1264 = vmatpush2.bf16.msra.mxu0 0
      %1265 = vmatprep.subr.bf16.mxu0 0
      %1266 = vmatpush2.bf16.msra.mxu0 0
      %1267 = vmatprep.mubr.bf16.mxu0 0
      %1268 = vmatmul.mubr.bf16.gmra.mxu0 %v1167
      %v1269 = vpop.f32.mrf.mxu0
      %v1270 = vadd.f32 0.0, %v1269
      %v1271 = vpop.f32.mrf.mxu0
      %v1272 = vpop.f32.mrf.mxu0
      %v1273 = vadd.f32 0.0, %v1272
      %v1274 = vpop.f32.mrf.mxu0
      %1275 = vmatprep.mubr.bf16.mxu0 0
      %1276 = vmatmul.mubr.bf16.gmra.mxu0 %v1168
      %v1277 = vpop.f32.mrf.mxu0
      %v1278 = vadd.f32 0.0, %v1277
      %v1279 = vpop.f32.mrf.mxu0
      %v1280 = vpop.f32.mrf.mxu0
      %v1281 = vadd.f32 0.0, %v1280
      %v1282 = vpop.f32.mrf.mxu0
      %1283 = vmatprep.mubr.bf16.mxu0 0
      %1284 = vmatmul.mubr.bf16.gmra.mxu0 %v1169
      %v1285 = vpop.f32.mrf.mxu0
      %v1286 = vadd.f32 0.0, %v1285
      %v1287 = vpop.f32.mrf.mxu0
      %v1288 = vpop.f32.mrf.mxu0
      %v1289 = vadd.f32 0.0, %v1288
      %v1290 = vpop.f32.mrf.mxu0
      %1291 = vmatprep.mubr.bf16.mxu0 0
      %1292 = vmatmul.mubr.bf16.gmra.mxu0 %v1170
      %v1293 = vpop.f32.mrf.mxu0
      %v1294 = vadd.f32 0.0, %v1293
      %v1295 = vpop.f32.mrf.mxu0
      %v1296 = vpop.f32.mrf.mxu0
      %v1297 = vadd.f32 0.0, %v1296
      %v1298 = vpop.f32.mrf.mxu0
      %1299 = vdwg.mxu0
      %v1300 = vpack.c.bf16 %v1273, %v1270
      %v1301 = vpack.c.bf16 %v1281, %v1278
      %v1302 = vpack.c.bf16 %v1289, %v1286
      %v1303 = vpack.c.bf16 %v1297, %v1294
      %v1308 = vunpack.c.l.b16 %v1300
      %v1309 = vunpack.c.h.b16 %v1300
      %v1310 = vunpack.c.l.b16 %v1301
      %v1311 = vunpack.c.h.b16 %v1301
      %v1312 = vunpack.c.l.b16 %v1302
      %v1313 = vunpack.c.h.b16 %v1302
      %v1314 = vunpack.c.l.b16 %v1303
      %v1315 = vunpack.c.h.b16 %v1303
      %v1316 = vpack.c.b16 %v1308, %v1308
      %v1317 = vpack.c.b16 %v1309, %v1309
      %v1318 = vpack.c.b16 %v1310, %v1310
      %v1319 = vpack.c.b16 %v1311, %v1311
      %v1320 = vpack.c.b16 %v1312, %v1312
      %v1321 = vpack.c.b16 %v1313, %v1313
      %v1322 = vpack.c.b16 %v1314, %v1314
      %v1323 = vpack.c.b16 %v1315, %v1315
      %vm1332 = vcmask 257024
      %1333 = vst.msk [vmem:[%s361] sm:$0xf] %vm1332, %v1316
      %1334 = vst.msk [vmem:[%s361 + $0x4] sm:$0xf] %vm1332, %v1317
      %1335 = vst.msk [vmem:[%s361 + $0x8] sm:$0xf] %vm1332, %v1318
      %1336 = vst.msk [vmem:[%s361 + $0xc] sm:$0xf] %vm1332, %v1319
      %1337 = vst.msk [vmem:[%s361 + $0x10] sm:$0xf] %vm1332, %v1320
      %1338 = vst.msk [vmem:[%s361 + $0x14] sm:$0xf] %vm1332, %v1321
      %1339 = vst.msk [vmem:[%s361 + $0x18] sm:$0xf] %vm1332, %v1322
      %1340 = vst.msk [vmem:[%s361 + $0x1c] sm:$0xf] %vm1332, %v1323
      %s1341 = smul.u32 8, %s21
      %p1342 = scmp.lt.s32.totalorder %s1341, 15
      %s1343 = scalar_select %p1342, %s1341, 15
      %s1344 = smul.addr %s1343, 4
      %s1345 = scalar_lea.vmem %s10, %s1344
      // Predicated region
      $region61: #{network_wrapper_forward.1} parent=59 // pred_check
        %p1346 = pneg %p254
      $region62: #{network_wrapper_forward.1} parent=59 // pred_check_branch
        %1348 = sbr.rel (%p1346) target = $region64
      $region63: #{network_wrapper_forward.1} parent=59 // pred_region
        %s1349 = smul.u32 8, %s21
      $region64: #{network_wrapper_forward.1} parent=59 // pred_fallthru
        _
    $region60: #{network_wrapper_forward.1} parent=5 // pred_fallthru
      _
    %p1350 = scmp.le.s32.totalorder 2, %s16
    // Predicated region
    $region65: #{network_wrapper_forward.1} parent=5 // pred_check
      %p1351 = pneg %p1350
    $region66: #{network_wrapper_forward.1} parent=5 // pred_check_branch
      %1353 = sbr.rel (%p1351) target = $region68
    $region67: #{network_wrapper_forward.1} parent=5 // pred_region
      %s1354 = ssub.s32 %s16, 2
      // Predicated region
      $region69: #{network_wrapper_forward.1} parent=67 // pred_check
        %p1355 = pneg %p260
      $region70: #{network_wrapper_forward.1} parent=67 // pred_check_branch
        %1357 = sbr.rel (%p1355) target = $region72
      $region71: #{network_wrapper_forward.1} parent=67 // pred_region
        %s1358 = smul.u32 8, %s22
        %p1359 = scmp.lt.s32.totalorder %s1358, 15
        %s1360 = scalar_select %p1359, %s1358, 15
        %s1361 = smul.addr %s1360, 4
        %s1362 = scalar_lea.vmem %s10, %s1361
      $region72: #{network_wrapper_forward.1} parent=67 // pred_fallthru
        _
    $region68: #{network_wrapper_forward.1} parent=5 // pred_fallthru
      _
  $region6: #{network_wrapper_forward.1} parent=0 // loop_footer
    %s20 = sadd.s32 1, %s16
  $region7: #{network_wrapper_forward.1} parent=0 // loop_footer_branch
    %15 = sbr.rel target = $region3
  $region8: #{network_wrapper_forward.1} parent=0 // loop_exit
    _

</llo_original>
